<compile_context>
chip_gen: v7x
topology: tpu7x:2x2x1
jax: 0.10.0
libtpu: 0.0.40
codegen_flags: <defaults>
</compile_context>

<pallas_src>
import jax
import jax.numpy as jnp
from jax.experimental import pallas as pl
from jax.experimental.pallas import tpu as pltpu


def _film_kernel(cond_ref, w1_ref, b1_ref, w2_ref, b2_ref, tgt_ref, out_ref):
    # cond_ref : (TB, D_cond)          -- this tile's (already reduced) condition rows
    # w1_ref   : (D_cond, H)              b1_ref : (1, H)
    # w2_ref   : (H, 2*G)                 b2_ref : (1, 2*G)   fused [gamma | beta] head,
    #                                     already lane-tiled k times (G = k * D_target)
    # tgt_ref  : (TB, N//k, G)            out_ref: (TB, N//k, G)
    g = w2_ref.shape[-1] // 2

    # Batched condition MLP (f32 accumulation on the MXU).
    h = jnp.dot(cond_ref[...], w1_ref[...], preferred_element_type=jnp.float32)
    h = jnp.maximum(h + b1_ref[...].astype(jnp.float32), 0.0)            # ReLU, (TB, H)
    gb = jnp.dot(h, w2_ref[...], preferred_element_type=jnp.float32)
    gb = gb + b2_ref[...].astype(jnp.float32)                            # (TB, 2*G)

    # gamma/beta come out of the matmul already tiled along lanes; slice at the
    # G boundary (128-aligned whenever k > 1) and modulate in the output dtype.
    dt = out_ref.dtype
    gamma = gb[:, :g].astype(dt)[:, None, :]                             # (TB, 1, G)
    beta = gb[:, g:].astype(dt)[:, None, :]                              # (TB, 1, G)
    out_ref[...] = tgt_ref[...] * gamma + beta                           # sublane bcast


def film_forward(target_features, condition_features, params, *, block_batch=8):
    """target_features: (B, N, D_target); condition_features: (B, 1, D_cond).

    block_batch: batch rows per grid step (use a multiple of 8; raise it for large B
    to amortize the ~0.35 us/step overhead while keeping the double-buffered target
    tiles within VMEM -- size for v7x's 64 MiB if targeting that generation).
    """
    B, N, D_t = target_features.shape
    Bc, S_c, D_c = condition_features.shape
    assert Bc == B and S_c == 1, "valid PyTorch path requires condition shape (B, 1, D_cond)"
    cond2d = condition_features.reshape(B, D_c)                          # squeeze(1)

    w1, b1, w2, b2 = params["w1"], params["b1"], params["w2"], params["b2"]
    H = w1.shape[1]
    assert w2.shape == (H, 2 * D_t) and b2.shape == (1, 2 * D_t)

    # Lane-folding factor: pack k tokens into the lane axis so the output block's
    # minor dim is a multiple of 128 (unmasked wide stores), when shapes allow it.
    if D_t % 128 == 0:
        k = 1                                    # already lane-dense
    elif 128 % D_t == 0 and N % (128 // D_t) == 0:
        k = 128 // D_t
    else:
        k = 1                                    # fallback: masked (sub-128) stores
    G = k * D_t
    Nk = N // k

    # Pre-tile the fused second-layer weights/bias k times along their output dim so
    # the in-kernel matmul directly yields lane-tiled [gamma | beta].  Tiny (H, 2*G)
    # arrays -- pure glue, hoisted/constant-folded under jit.
    w2g, w2b = w2[:, :D_t], w2[:, D_t:]
    b2g, b2b = b2[:, :D_t], b2[:, D_t:]
    w2t = jnp.concatenate([jnp.tile(w2g, (1, k)), jnp.tile(w2b, (1, k))], axis=1)  # (H, 2G)
    b2t = jnp.concatenate([jnp.tile(b2g, (1, k)), jnp.tile(b2b, (1, k))], axis=1)  # (1, 2G)

    tgt = target_features.reshape(B, Nk, G)      # free row-major view

    # Batch tile: whole batch if small, else a multiple-of-8 tile.  A partial final
    # tile is safe: padded condition rows produce garbage gamma rows that are masked
    # out on the output write (rows are independent).
    tb = B if B <= block_batch else block_batch
    grid = (pl.cdiv(B, tb),)

    grid_spec = pltpu.PrefetchScalarGridSpec(
        num_scalar_prefetch=0,
        grid=grid,
        in_specs=[
            pl.BlockSpec((tb, D_c), lambda b: (b, 0)),       # condition rows (batched)
            pl.BlockSpec((D_c, H), lambda b: (0, 0)),        # W1       (VMEM-resident)
            pl.BlockSpec((1, H), lambda b: (0, 0)),          # b1
            pl.BlockSpec((H, 2 * G), lambda b: (0, 0)),      # fused, lane-tiled W2
            pl.BlockSpec((1, 2 * G), lambda b: (0, 0)),      # fused, lane-tiled b2
            pl.BlockSpec((tb, Nk, G), lambda b: (b, 0, 0)),  # target tile
        ],
        out_specs=pl.BlockSpec((tb, Nk, G), lambda b: (b, 0, 0)),
    )

    out = pl.pallas_call(
        _film_kernel,
        out_shape=jax.ShapeDtypeStruct((B, Nk, G), target_features.dtype),
        grid_spec=grid_spec,
        compiler_params=pltpu.CompilerParams(
            dimension_semantics=("parallel",),   # batch tiles shard across TCs (v7x)
        ),
    )(cond2d, w1, b1, w2t, b2t, tgt)
    return out.reshape(B, N, D_t)


def init_film_params(key, target_dim, condition_dim, film_hidden_dim=None):
    if film_hidden_dim is None:
        film_hidden_dim = target_dim
    k1, k2, k3, k4 = jax.random.split(key, 4)
    # nn.Linear-style uniform init (deterministic via PRNGKey); biases non-zero so the
    # affine path is exercised.
    lim1 = 1.0 / (condition_dim ** 0.5)
    lim2 = 1.0 / (film_hidden_dim ** 0.5)
    return {
        "w1": jax.random.uniform(k1, (condition_dim, film_hidden_dim), jnp.float32, -lim1, lim1),
        "b1": jax.random.uniform(k2, (1, film_hidden_dim), jnp.float32, -lim1, lim1),
        "w2": jax.random.uniform(k3, (film_hidden_dim, 2 * target_dim), jnp.float32, -lim2, lim2),
        "b2": jax.random.uniform(k4, (1, 2 * target_dim), jnp.float32, -lim2, lim2),
    }


def film_reference(target_features, condition_features, params):
    """Pure-JAX reference mirroring the PyTorch forward (condition shape (B,1,D_cond))."""
    cond = condition_features.squeeze(1)
    h = jnp.maximum(cond @ params["w1"] + params["b1"], 0.0)
    p = h @ params["w2"] + params["b2"]
    D_t = target_features.shape[-1]
    gamma = p[:, :D_t][:, None, :]
    beta = p[:, D_t:][:, None, :]
    return target_features * gamma + beta


if __name__ == "__main__":
    B, N = 2, 8
    D_target, D_cond = 32, 16

    key = jax.random.PRNGKey(0)
    k_t, k_c, k_p = jax.random.split(key, 3)
    target = jax.random.normal(k_t, (B, N, D_target), dtype=jnp.float32)
    condition = jax.random.normal(k_c, (B, 1, D_cond), dtype=jnp.float32)
    params = init_film_params(k_p, D_target, D_cond)

    out = film_forward(target, condition, params)
    out = jax.block_until_ready(out)

    ref = film_reference(target, condition, params)
    assert out.shape == (B, N, D_target)
    assert jnp.allclose(out, ref, atol=1e-5, rtol=1e-5), "mismatch vs pure-JAX reference"

    print("KERNEL_OK")
</pallas_src>

<mosaic_0001>
module attributes {stable_mosaic.version = 11 : i64} {
  func.func @_film_kernel(%arg0: i32, %arg1: memref<2x16xf32, #tpu.memory_space<vmem>>, %arg2: memref<16x32xf32, #tpu.memory_space<vmem>>, %arg3: memref<1x32xf32, #tpu.memory_space<vmem>>, %arg4: memref<32x256xf32, #tpu.memory_space<vmem>>, %arg5: memref<1x256xf32, #tpu.memory_space<vmem>>, %arg6: memref<2x2x128xf32, #tpu.memory_space<vmem>>, %arg7: memref<2x2x128xf32, #tpu.memory_space<vmem>>) attributes {dimension_semantics = [#tpu.dimension_semantics<parallel>], iteration_bounds = array<i64: 1>, scalar_prefetch = 0 : i64, scratch_operands = 0 : i64, tpu.core_type = #tpu.core_type<tc>, window_params = [{transform_indices = @transform_0, window_bounds = array<i64: 2, 16>}, {pipeline_mode = #tpu.pipeline_mode<synchronous>, transform_indices = @transform_1, window_bounds = array<i64: 16, 32>}, {pipeline_mode = #tpu.pipeline_mode<synchronous>, transform_indices = @transform_2, window_bounds = array<i64: 1, 32>}, {pipeline_mode = #tpu.pipeline_mode<synchronous>, transform_indices = @transform_3, window_bounds = array<i64: 32, 256>}, {pipeline_mode = #tpu.pipeline_mode<synchronous>, transform_indices = @transform_4, window_bounds = array<i64: 1, 256>}, {transform_indices = @transform_5, window_bounds = array<i64: 2, 2, 128>}, {transform_indices = @transform_6, window_bounds = array<i64: 2, 2, 128>}]} {
    %c0 = arith.constant 0 : index
    %c0_0 = arith.constant 0 : index
    %0 = vector.load %arg1[%c0, %c0_0] : memref<2x16xf32, #tpu.memory_space<vmem>>, vector<2x16xf32>
    %c0_1 = arith.constant 0 : index
    %c0_2 = arith.constant 0 : index
    %1 = vector.load %arg2[%c0_1, %c0_2] : memref<16x32xf32, #tpu.memory_space<vmem>>, vector<16x32xf32>
    %cst = arith.constant dense<0.000000e+00> : vector<2x32xf32>
    %2 = tpu.matmul %0, %1, %cst {dimension_numbers = #tpu.dot_dimension_numbers<[1], [0], [0], [1], [0, 0, 1, 1], [], []>} : vector<2x16xf32>, vector<16x32xf32>, vector<2x32xf32> -> vector<2x32xf32>
    %c0_3 = arith.constant 0 : index
    %c0_4 = arith.constant 0 : index
    %3 = vector.load %arg3[%c0_3, %c0_4] : memref<1x32xf32, #tpu.memory_space<vmem>>, vector<1x32xf32>
    %4 = vector.broadcast %3 : vector<1x32xf32> to vector<2x32xf32>
    %5 = arith.addf %2, %4 : vector<2x32xf32>
    %cst_5 = arith.constant 0.000000e+00 : f32
    %6 = vector.broadcast %cst_5 : f32 to vector<2x32xf32>
    %7 = arith.maximumf %5, %6 : vector<2x32xf32>
    %c0_6 = arith.constant 0 : index
    %c0_7 = arith.constant 0 : index
    %8 = vector.load %arg4[%c0_6, %c0_7] : memref<32x256xf32, #tpu.memory_space<vmem>>, vector<32x256xf32>
    %cst_8 = arith.constant dense<0.000000e+00> : vector<2x256xf32>
    %9 = tpu.matmul %7, %8, %cst_8 {dimension_numbers = #tpu.dot_dimension_numbers<[1], [0], [0], [1], [0, 0, 1, 1], [], []>} : vector<2x32xf32>, vector<32x256xf32>, vector<2x256xf32> -> vector<2x256xf32>
    %c0_9 = arith.constant 0 : index
    %c0_10 = arith.constant 0 : index
    %10 = vector.load %arg5[%c0_9, %c0_10] : memref<1x256xf32, #tpu.memory_space<vmem>>, vector<1x256xf32>
    %11 = vector.broadcast %10 : vector<1x256xf32> to vector<2x256xf32>
    %12 = arith.addf %9, %11 : vector<2x256xf32>
    %13 = vector.extract_strided_slice %12 {offsets = [0, 0], sizes = [2, 128], strides = [1, 1]} : vector<2x256xf32> to vector<2x128xf32>
    %14 = vector.shape_cast %13 : vector<2x128xf32> to vector<2x1x128xf32>
    %15 = vector.extract_strided_slice %12 {offsets = [0, 128], sizes = [2, 128], strides = [1, 1]} : vector<2x256xf32> to vector<2x128xf32>
    %16 = vector.shape_cast %15 : vector<2x128xf32> to vector<2x1x128xf32>
    %c0_11 = arith.constant 0 : index
    %c0_12 = arith.constant 0 : index
    %c0_13 = arith.constant 0 : index
    %17 = vector.load %arg6[%c0_11, %c0_12, %c0_13] : memref<2x2x128xf32, #tpu.memory_space<vmem>>, vector<2x2x128xf32>
    %18 = vector.broadcast %14 : vector<2x1x128xf32> to vector<2x2x128xf32>
    %19 = arith.mulf %17, %18 : vector<2x2x128xf32>
    %20 = vector.broadcast %16 : vector<2x1x128xf32> to vector<2x2x128xf32>
    %21 = arith.addf %19, %20 : vector<2x2x128xf32>
    %c0_14 = arith.constant 0 : index
    %c0_15 = arith.constant 0 : index
    %c0_16 = arith.constant 0 : index
    %22 = vector.load %arg7[%c0_14, %c0_15, %c0_16] : memref<2x2x128xf32, #tpu.memory_space<vmem>>, vector<2x2x128xf32>
    tpu.vector_store %arg7[%c0_14, %c0_15, %c0_16], %21 {strides = array<i32>} : memref<2x2x128xf32, #tpu.memory_space<vmem>>, vector<2x2x128xf32>,
    return
  }
  func.func @transform_0(%arg0: i32) -> (i32, i32) {
    %c0_i32 = arith.constant 0 : i32
    %c0_i32_0 = arith.constant 0 : i32
    return %arg0, %c0_i32 : i32, i32
  }
  func.func @transform_1(%arg0: i32) -> (i32, i32) {
    %c0_i32 = arith.constant 0 : i32
    %c0_i32_0 = arith.constant 0 : i32
    %c0_i32_1 = arith.constant 0 : i32
    return %c0_i32, %c0_i32_0 : i32, i32
  }
  func.func @transform_2(%arg0: i32) -> (i32, i32) {
    %c0_i32 = arith.constant 0 : i32
    %c0_i32_0 = arith.constant 0 : i32
    %c0_i32_1 = arith.constant 0 : i32
    return %c0_i32, %c0_i32_0 : i32, i32
  }
  func.func @transform_3(%arg0: i32) -> (i32, i32) {
    %c0_i32 = arith.constant 0 : i32
    %c0_i32_0 = arith.constant 0 : i32
    %c0_i32_1 = arith.constant 0 : i32
    return %c0_i32, %c0_i32_0 : i32, i32
  }
  func.func @transform_4(%arg0: i32) -> (i32, i32) {
    %c0_i32 = arith.constant 0 : i32
    %c0_i32_0 = arith.constant 0 : i32
    %c0_i32_1 = arith.constant 0 : i32
    return %c0_i32, %c0_i32_0 : i32, i32
  }
  func.func @transform_5(%arg0: i32) -> (i32, i32, i32) {
    %c0_i32 = arith.constant 0 : i32
    %c0_i32_0 = arith.constant 0 : i32
    %c0_i32_1 = arith.constant 0 : i32
    return %arg0, %c0_i32, %c0_i32_0 : i32, i32, i32
  }
  func.func @transform_6(%arg0: i32) -> (i32, i32, i32) {
    %c0_i32 = arith.constant 0 : i32
    %c0_i32_0 = arith.constant 0 : i32
    %c0_i32_1 = arith.constant 0 : i32
    return %arg0, %c0_i32, %c0_i32_0 : i32, i32, i32
  }
}

</mosaic_0001>

<llo_original>
// kernel: tpu_custom_call.1
$region0: #{tpu_custom_call.1}
  #allocation0 [shape = 'u32[]', space=smem, size = 0x4, offset = 0x4, fixed_abs, tag = 'smem constant byte address 0x4 - core index']
  #allocation1 [shape = 'u32[144,128]{1,0:T(1,128)}', space=vmem, size = 0x12000, scoped, tag = 'internal scratch']
  %s0 = inlined_call_operand.hbm [shape: f32[2,16], index: 0, kind: input, shape index: {}]
  %s1 = inlined_call_operand.hbm [shape: f32[16,32], index: 1, kind: input, shape index: {}]
  %s2 = inlined_call_operand.vmem [shape: f32[1,32], index: 2, kind: input, shape index: {}]
  %s3 = inlined_call_operand.hbm [shape: f32[32,256], index: 3, kind: input, shape index: {}]
  %s4 = inlined_call_operand.vmem [shape: f32[1,256], index: 4, kind: input, shape index: {}]
  %s5 = inlined_call_operand.vmem [shape: f32[2,2,128], index: 5, kind: input, shape index: {}]
  %s6 = inlined_call_operand.hbm [shape: f32[2,2,128], index: 6, kind: output, shape index: {}]
  %s7 = sld [smem:[#allocation0]]
  $region46: #{tpu_custom_call.1} parent=0
    _
  %s9 = ssub.s32 1, %s7
  %s10 = scalar_select 0, %s9, %s7
  $region1: #{tpu_custom_call.1} parent=0
    #allocation2 [shape = 'u8[1024]{0}', space=vmem, size = 0x400, scoped, tag = 'input window, operand 0, single buffered']
    #allocation3 [shape = 's32[1]{0}', space=sflag, size = 0x4, scoped, tag = 'scoped memory for tpu_custom_call.1']
    #allocation4 [shape = 's32[1]{0}', space=sflag, size = 0x4, scoped, tag = 'scoped memory for tpu_custom_call.1']
    #allocation5 [shape = 'u8[8192]{0}', space=vmem, size = 0x2000, scoped, tag = 'input window, operand 1, single buffered']
    #allocation6 [shape = 's32[1]{0}', space=sflag, size = 0x4, scoped, tag = 'scoped memory for tpu_custom_call.1']
    #allocation7 [shape = 'u8[32768]{0}', space=vmem, size = 0x8000, scoped, tag = 'input window, operand 3, single buffered']
    #allocation8 [shape = 'u8[2048]{0}', space=vmem, size = 0x800, scoped, tag = 'output window, operand 0, single buffered']
    %11 = vsyncpa [#allocation3], 0
    %12 = vsyncpa [#allocation6], 0
    %13 = vsyncpa [#allocation4], 0
    // Predicated region
    $region2: #{tpu_custom_call.1} parent=1 // pred_check
      _
    $region3: #{tpu_custom_call.1} parent=1 // pred_check_branch
      %15 = sbr.rel (0) target = $region5
    $region4: #{tpu_custom_call.1} parent=1 // pred_region
      %s17 = ssub.s32 32, 32
      %18 = vsyncadd [#allocation3], %s17
      %s20 = sshll.u32 [#allocation2], 4
      %s21 = int_to_ptr.vmem [resolvable:$true] %s20
      %23 = dma.hbm_to_vmem [thread:$0]  %s0, 32, %s21, [#allocation3]
    $region5: #{tpu_custom_call.1} parent=1 // pred_fallthru
      _
    // Predicated region
    $region6: #{tpu_custom_call.1} parent=1 // pred_check
      _
    $region7: #{tpu_custom_call.1} parent=1 // pred_check_branch
      %25 = sbr.rel (0) target = $region9
    $region8: #{tpu_custom_call.1} parent=1 // pred_region
      %s27 = ssub.s32 256, 256
      %28 = vsyncadd [#allocation6], %s27
      %s29 = sshll.u32 [#allocation5], 4
      %s30 = int_to_ptr.vmem [resolvable:$true] %s29
      %35 = dma.hbm_to_vmem [thread:$0]  %s1, 256, %s30, [#allocation6], 128, 128, 8
    $region9: #{tpu_custom_call.1} parent=1 // pred_fallthru
      _
    // Predicated region
    $region10: #{tpu_custom_call.1} parent=1 // pred_check
      _
    $region11: #{tpu_custom_call.1} parent=1 // pred_check_branch
      %37 = sbr.rel (0) target = $region13
    $region12: #{tpu_custom_call.1} parent=1 // pred_region
      _
    $region13: #{tpu_custom_call.1} parent=1 // pred_fallthru
      _
    // Predicated region
    $region14: #{tpu_custom_call.1} parent=1 // pred_check
      _
    $region15: #{tpu_custom_call.1} parent=1 // pred_check_branch
      %39 = sbr.rel (0) target = $region17
    $region16: #{tpu_custom_call.1} parent=1 // pred_region
      %s41 = ssub.s32 1024, 1024
      %42 = vsyncadd [#allocation6], %s41
      %s43 = sshll.u32 [#allocation7], 4
      %s44 = int_to_ptr.vmem [resolvable:$true] %s43
      %49 = dma.hbm_to_vmem [thread:$0]  %s3, 1024, %s44, [#allocation6], 256, 256, 16
    $region17: #{tpu_custom_call.1} parent=1 // pred_fallthru
      _
    // Predicated region
    $region18: #{tpu_custom_call.1} parent=1 // pred_check
      _
    $region19: #{tpu_custom_call.1} parent=1 // pred_check_branch
      %51 = sbr.rel (0) target = $region21
    $region20: #{tpu_custom_call.1} parent=1 // pred_region
      _
    $region21: #{tpu_custom_call.1} parent=1 // pred_fallthru
      _
    // Predicated region
    $region22: #{tpu_custom_call.1} parent=1 // pred_check
      _
    $region23: #{tpu_custom_call.1} parent=1 // pred_check_branch
      %53 = sbr.rel (0) target = $region25
    $region24: #{tpu_custom_call.1} parent=1 // pred_region
      _
    $region25: #{tpu_custom_call.1} parent=1 // pred_fallthru
      _
    // Predicated region
    $region26: #{tpu_custom_call.1} parent=1 // pred_check
      _
    $region27: #{tpu_custom_call.1} parent=1 // pred_check_branch
      %55 = sbr.rel (0) target = $region29
    $region28: #{tpu_custom_call.1} parent=1 // pred_region
      %56 = dma.done [#allocation3], 32
    $region29: #{tpu_custom_call.1} parent=1 // pred_fallthru
      _
    // Predicated region
    $region30: #{tpu_custom_call.1} parent=1 // pred_check
      _
    $region31: #{tpu_custom_call.1} parent=1 // pred_check_branch
      %58 = sbr.rel (0) target = $region33
    $region32: #{tpu_custom_call.1} parent=1 // pred_region
      %59 = dma.done [#allocation6], 256
    $region33: #{tpu_custom_call.1} parent=1 // pred_fallthru
      _
    // Predicated region
    $region34: #{tpu_custom_call.1} parent=1 // pred_check
      _
    $region35: #{tpu_custom_call.1} parent=1 // pred_check_branch
      %61 = sbr.rel (0) target = $region37
    $region36: #{tpu_custom_call.1} parent=1 // pred_region
      %62 = dma.done [#allocation6], 1024
    $region37: #{tpu_custom_call.1} parent=1 // pred_fallthru
      _
    %v63 = vld [vmem:[#allocation2] sm:$0x3]
    %v64 = vld [vmem:[#allocation5] sm:$0xff]
    %v65 = vld [vmem:[#allocation5 + $0x8] sm:$0xff]
    %v66 = vld [vmem:[%s2] sm:$0x1]
    %v68 = vlaneseq
    %v69 = vshrl.u32 %v68, 7
    %v70 = vsub.s32 0, %v69
    %v71 = vrot.slane %v66, %v70
    %vm73 = vcmask 130048
    %v75 = vsel %vm73, %v63, 0
    %77 = vmatprep.subr.mxu0 0.0
    %78 = vmatpush1.msra.mxu0 %v64
    %79 = vmatprep.subr.mxu0 0.0
    %80 = vmatpush1.msra.mxu0 %v65
    %81 = vmatprep.subr.mxu0 0.0
    %82 = vmatpush1.msra.mxu0 0.0
    %83 = vmatprep.subr.mxu0 0.0
    %84 = vmatpush1.msra.mxu0 0.0
    %85 = vmatprep.subr.mxu0 0.0
    %86 = vmatpush1.msra.mxu0 0.0
    %87 = vmatprep.subr.mxu0 0.0
    %88 = vmatpush1.msra.mxu0 0.0
    %89 = vmatprep.subr.mxu0 0.0
    %90 = vmatpush1.msra.mxu0 0.0
    %91 = vmatprep.subr.mxu0 0.0
    %92 = vmatpush1.msra.mxu0 0.0
    %93 = vmatprep.subr.mxu0 0.0
    %94 = vmatpush1.msra.mxu0 0.0
    %95 = vmatprep.subr.mxu0 0.0
    %96 = vmatpush1.msra.mxu0 0.0
    %97 = vmatprep.subr.mxu0 0.0
    %98 = vmatpush1.msra.mxu0 0.0
    %99 = vmatprep.subr.mxu0 0.0
    %100 = vmatpush1.msra.mxu0 0.0
    %101 = vmatprep.subr.mxu0 0.0
    %102 = vmatpush1.msra.mxu0 0.0
    %103 = vmatprep.subr.mxu0 0.0
    %104 = vmatpush1.msra.mxu0 0.0
    %105 = vmatprep.subr.mxu0 0.0
    %106 = vmatpush1.msra.mxu0 0.0
    %107 = vmatprep.subr.mxu0 0.0
    %108 = vmatpush1.msra.mxu0 0.0
    %109 = vmatprep.subr.mxu0 0.0
    %110 = vmatpush1.msra.mxu0 0.0
    %111 = vmatprep.subr.mxu0 0.0
    %112 = vmatpush1.msra.mxu0 0.0
    %113 = vmatprep.subr.mxu0 0.0
    %114 = vmatpush1.msra.mxu0 0.0
    %115 = vmatprep.subr.mxu0 0.0
    %116 = vmatpush1.msra.mxu0 0.0
    %117 = vmatprep.subr.mxu0 0.0
    %118 = vmatpush1.msra.mxu0 0.0
    %119 = vmatprep.subr.mxu0 0.0
    %120 = vmatpush1.msra.mxu0 0.0
    %121 = vmatprep.subr.mxu0 0.0
    %122 = vmatpush1.msra.mxu0 0.0
    %123 = vmatprep.subr.mxu0 0.0
    %124 = vmatpush1.msra.mxu0 0.0
    %125 = vmatprep.subr.mxu0 0.0
    %126 = vmatpush1.msra.mxu0 0.0
    %127 = vmatprep.subr.mxu0 0.0
    %128 = vmatpush1.msra.mxu0 0.0
    %129 = vmatprep.subr.mxu0 0.0
    %130 = vmatpush1.msra.mxu0 0.0
    %131 = vmatprep.subr.mxu0 0.0
    %132 = vmatpush1.msra.mxu0 0.0
    %133 = vmatprep.subr.mxu0 0.0
    %134 = vmatpush1.msra.mxu0 0.0
    %135 = vmatprep.subr.mxu0 0.0
    %136 = vmatpush1.msra.mxu0 0.0
    %137 = vmatprep.subr.mxu0 0.0
    %138 = vmatpush1.msra.mxu0 0.0
    %139 = vmatprep.subr.mxu0 0.0
    %140 = vmatpush1.msra.mxu0 0.0
    %141 = vmatprep.mubr.f32.mxu0 0.0
    %142 = vmatmul.mubr.f32.gmra.mrb[0].mxu0 %v75
    %v143 = vpop.f32.mrb[0].mxu0
    %v144 = vadd.f32 %v71, %v143
    %v145 = vpop.f32.mrb[0].mxu0
    %146 = vdwg.mxu0
    %v147 = vmax.f32 %v144, 0.0
    %v148 = vld [vmem:[#allocation7] sm:$0xff]
    %v149 = vld [vmem:[#allocation7 + $0x8] sm:$0xff]
    %v150 = vld [vmem:[#allocation7 + $0x10] sm:$0xff]
    %v151 = vld [vmem:[#allocation7 + $0x18] sm:$0xff]
    %v152 = vld [vmem:[#allocation7 + $0x20] sm:$0xff]
    %v153 = vld [vmem:[#allocation7 + $0x28] sm:$0xff]
    %v154 = vld [vmem:[#allocation7 + $0x30] sm:$0xff]
    %v155 = vld [vmem:[#allocation7 + $0x38] sm:$0xff]
    %v156 = vld [vmem:[%s4] sm:$0x3]
    %v158 = vlaneseq
    %v159 = vshrl.u32 %v158, 7
    %v160 = vsub.s32 0, %v159
    %v161 = vrot.slane %v156, %v160
    %v162 = vlaneseq
    %v163 = vshrl.u32 %v162, 7
    %v164 = vsub.s32 1, %v163
    %v165 = vrot.slane %v156, %v164
    %vm168 = vcmask 261120
    %v170 = vsel %vm168, %v147, 0
    %172 = vmatprep.subr.mxu0 %v149
    %173 = vmatpush1.msra.mxu0 %v148
    %174 = vmatprep.subr.mxu0 %v151
    %175 = vmatpush1.msra.mxu0 %v150
    %176 = vmatprep.subr.mxu0 %v153
    %177 = vmatpush1.msra.mxu0 %v152
    %178 = vmatprep.subr.mxu0 %v155
    %179 = vmatpush1.msra.mxu0 %v154
    %180 = vmatprep.subr.mxu0 0.0
    %181 = vmatpush1.msra.mxu0 0.0
    %182 = vmatprep.subr.mxu0 0.0
    %183 = vmatpush1.msra.mxu0 0.0
    %184 = vmatprep.subr.mxu0 0.0
    %185 = vmatpush1.msra.mxu0 0.0
    %186 = vmatprep.subr.mxu0 0.0
    %187 = vmatpush1.msra.mxu0 0.0
    %188 = vmatprep.subr.mxu0 0.0
    %189 = vmatpush1.msra.mxu0 0.0
    %190 = vmatprep.subr.mxu0 0.0
    %191 = vmatpush1.msra.mxu0 0.0
    %192 = vmatprep.subr.mxu0 0.0
    %193 = vmatpush1.msra.mxu0 0.0
    %194 = vmatprep.subr.mxu0 0.0
    %195 = vmatpush1.msra.mxu0 0.0
    %196 = vmatprep.subr.mxu0 0.0
    %197 = vmatpush1.msra.mxu0 0.0
    %198 = vmatprep.subr.mxu0 0.0
    %199 = vmatpush1.msra.mxu0 0.0
    %200 = vmatprep.subr.mxu0 0.0
    %201 = vmatpush1.msra.mxu0 0.0
    %202 = vmatprep.subr.mxu0 0.0
    %203 = vmatpush1.msra.mxu0 0.0
    %204 = vmatprep.subr.mxu0 0.0
    %205 = vmatpush1.msra.mxu0 0.0
    %206 = vmatprep.subr.mxu0 0.0
    %207 = vmatpush1.msra.mxu0 0.0
    %208 = vmatprep.subr.mxu0 0.0
    %209 = vmatpush1.msra.mxu0 0.0
    %210 = vmatprep.subr.mxu0 0.0
    %211 = vmatpush1.msra.mxu0 0.0
    %212 = vmatprep.subr.mxu0 0.0
    %213 = vmatpush1.msra.mxu0 0.0
    %214 = vmatprep.subr.mxu0 0.0
    %215 = vmatpush1.msra.mxu0 0.0
    %216 = vmatprep.subr.mxu0 0.0
    %217 = vmatpush1.msra.mxu0 0.0
    %218 = vmatprep.subr.mxu0 0.0
    %219 = vmatpush1.msra.mxu0 0.0
    %220 = vmatprep.subr.mxu0 0.0
    %221 = vmatpush1.msra.mxu0 0.0
    %222 = vmatprep.subr.mxu0 0.0
    %223 = vmatpush1.msra.mxu0 0.0
    %224 = vmatprep.subr.mxu0 0.0
    %225 = vmatpush1.msra.mxu0 0.0
    %226 = vmatprep.subr.mxu0 0.0
    %227 = vmatpush1.msra.mxu0 0.0
    %228 = vmatprep.subr.mxu0 0.0
    %229 = vmatpush1.msra.mxu0 0.0
    %230 = vmatprep.subr.mxu0 0.0
    %231 = vmatpush1.msra.mxu0 0.0
    %232 = vmatprep.subr.mxu0 0.0
    %233 = vmatpush1.msra.mxu0 0.0
    %234 = vmatprep.subr.mxu0 0.0
    %235 = vmatpush1.msra.mxu0 0.0
    %236 = vmatprep.mubr.f32.mxu0 0.0
    %237 = vmatmul.mubr.f32.gmra.mrb[0].mxu0 %v170
    %v238 = vpop.f32.mrb[0].mxu0
    %v239 = vadd.f32 %v161, %v238
    %v240 = vpop.f32.mrb[0].mxu0
    %v241 = vadd.f32 %v165, %v240
    %242 = vdwg.mxu0
    %v245 = vunpack.c.l.s4 1966171168
    %v246 = vunpack.c.0.s8 %v245
    %v247 = vlaneseq
    %v248 = vshrl.u32 %v247, 7
    %v249 = vsub.s32 %v246, %v248
    %v250 = vrot.slane %v239, %v249
    %v251 = vcombine.high %v250, %v250
    %v253 = vunpack.c.l.s4 1966171168
    %v254 = vunpack.c.0.s8 %v253
    %v255 = vlaneseq
    %v256 = vshrl.u32 %v255, 7
    %v257 = vsub.s32 %v254, %v256
    %v258 = vrot.slane %v250, %v257
    %v260 = vunpack.c.l.s4 1966171168
    %v261 = vunpack.c.0.s8 %v260
    %v262 = vlaneseq
    %v263 = vshrl.u32 %v262, 7
    %v264 = vsub.s32 %v261, %v263
    %v265 = vrot.slane %v251, %v264
    %v268 = vunpack.c.l.s4 1966171168
    %v269 = vunpack.c.0.s8 %v268
    %v270 = vlaneseq
    %v271 = vshrl.u32 %v270, 7
    %v272 = vsub.s32 %v269, %v271
    %v273 = vrot.slane %v241, %v272
    %v274 = vcombine.high %v273, %v273
    %v276 = vunpack.c.l.s4 1966171168
    %v277 = vunpack.c.0.s8 %v276
    %v278 = vlaneseq
    %v279 = vshrl.u32 %v278, 7
    %v280 = vsub.s32 %v277, %v279
    %v281 = vrot.slane %v273, %v280
    %v283 = vunpack.c.l.s4 1966171168
    %v284 = vunpack.c.0.s8 %v283
    %v285 = vlaneseq
    %v286 = vshrl.u32 %v285, 7
    %v287 = vsub.s32 %v284, %v286
    %v288 = vrot.slane %v274, %v287
    %v289 = vld [vmem:[%s5] sm:$0x3]
    %v290 = vld [vmem:[%s5 + $0x2] sm:$0x3]
    %v291 = vlaneseq
    %v292 = vshrl.u32 %v291, 7
    %v293 = vsub.s32 0, %v292
    %v294 = vrot.slane %v258, %v293
    %v295 = vlaneseq
    %v296 = vshrl.u32 %v295, 7
    %v297 = vsub.s32 0, %v296
    %v298 = vrot.slane %v265, %v297
    %v301 = vmul.f32 %v289, %v294
    %v302 = vmul.f32 %v290, %v298
    %v303 = vlaneseq
    %v304 = vshrl.u32 %v303, 7
    %v305 = vsub.s32 0, %v304
    %v306 = vrot.slane %v281, %v305
    %v307 = vlaneseq
    %v308 = vshrl.u32 %v307, 7
    %v309 = vsub.s32 0, %v308
    %v310 = vrot.slane %v288, %v309
    %v313 = vadd.f32 %v301, %v306
    %v314 = vadd.f32 %v302, %v310
    %315 = vst [vmem:[#allocation8] sm:$0x3] %v313
    %316 = vst [vmem:[#allocation8 + $0x2] sm:$0x3] %v314
    // Predicated region
    $region38: #{tpu_custom_call.1} parent=1 // pred_check
      _
    $region39: #{tpu_custom_call.1} parent=1 // pred_check_branch
      %318 = sbr.rel (0) target = $region41
    $region40: #{tpu_custom_call.1} parent=1 // pred_region
      %s320 = ssub.s32 64, 64
      %321 = vsyncadd [#allocation4], %s320
      %s322 = sshll.u32 [#allocation8], 4
      %s323 = int_to_ptr.vmem [resolvable:$true] %s322
      %328 = dma.vmem_to_hbm [thread:$0]  %s323, 64, %s6, [#allocation4], 32, 32, 2
    $region41: #{tpu_custom_call.1} parent=1 // pred_fallthru
      _
    // Predicated region
    $region42: #{tpu_custom_call.1} parent=1 // pred_check
      _
    $region43: #{tpu_custom_call.1} parent=1 // pred_check_branch
      %330 = sbr.rel (0) target = $region45
    $region44: #{tpu_custom_call.1} parent=1 // pred_region
      %331 = dma.done [#allocation4], 64
    $region45: #{tpu_custom_call.1} parent=1 // pred_fallthru
      _
    %332 = vsyncpa [#allocation3], 1
    %333 = vsyncpa [#allocation6], 1
    %334 = vsyncpa [#allocation4], 1

</llo_original>
